<compile_context>
chip_gen: v7x
topology: tpu7x:2x2x1
jax: 0.10.0
libtpu: 0.0.40
codegen_flags: <defaults>
</compile_context>

<pallas_src>
import functools

import jax
import jax.numpy as jnp
import numpy as np
from jax import lax
from jax.experimental import pallas as pl
from jax.experimental.pallas import tpu as pltpu


def poscnn_kernel(x_ref, w_ref, b_ref, o_ref, *, T, H, W, C):
    """Depthwise 3x3x3 conv (pad=1, stride=1) + bias + residual, one batch elem.

    x_ref : (1, T*H, W*C)   input tile, lane-dense
    w_ref : (27, T*H, W*C)  per-tap weight slabs (edge masks + residual folded in)
    b_ref : (1, W*C)        bias tiled across W
    o_ref : (1, T*H, W*C)   output tile
    """
    R = T * H
    WC = W * C

    # Resident input tile; cast once (no per-tap casts if x is bf16).
    src = x_ref[0].astype(jnp.float32)                      # (R, WC)

    # Two independent accumulators -> two parallel f32 add chains on the VPU.
    acc = [jnp.zeros((R, WC), jnp.float32),
           jnp.zeros((R, WC), jnp.float32)]

    n = 0
    for kw in range(3):
        # W shift: lane roll by +-C on the XLU.  Lanes that wrap across the W
        # edge are killed by the zeroed W-edge columns of the weight slabs.
        lane_shift = ((1 - kw) * C) % WC
        xw = src if lane_shift == 0 else pltpu.roll(src, lane_shift, axis=1)
        for kt in range(3):
            for kh in range(3):
                # Combined T/H shift: a single sublane roll of the flattened
                # (T*H) row dim.  Rows that wrap across t / h boundaries are
                # killed by the zeroed T/H-edge rows of the weight slabs.
                row_shift = ((1 - kt) * H + (1 - kh)) % R
                tap = xw if row_shift == 0 else pltpu.roll(xw, row_shift, axis=0)
                ti = kt * 9 + kh * 3 + kw
                acc[n & 1] = acc[n & 1] + tap * w_ref[ti]   # streamed weight slab
                n += 1

    out = acc[0] + (acc[1] + b_ref[...])                    # bias broadcast (1, WC)
    o_ref[0] = out.astype(o_ref.dtype)


def pos_cnn_forward(x, weight, bias):
    """x: (B, T, H, W, C); weight: (C, 1, 3, 3, 3) [PyTorch OIDHW]; bias: (C,)."""
    B, T, H, W, C = x.shape
    assert weight.shape == (C, 1, 3, 3, 3)
    R, WC = T * H, W * C

    # Per-tap weight slabs (27, T*H, W*C), f32:
    #   * tap value weight[c, kt, kh, kw] tiled across (t, h, w),
    #   * zeroed at output positions whose tap input falls outside the
    #     zero-padded volume (replaces halo padding / in-kernel masking),
    #   * residual (s == 1) folded into the centre tap (+1.0).
    wt = weight.astype(jnp.float32).reshape(C, 3, 3, 3)       # (C, kt, kh, kw)
    w27 = jnp.transpose(wt, (1, 2, 3, 0)).reshape(27, C)      # [kt*9+kh*3+kw, c]
    w27 = w27.at[13].add(1.0)                                 # identity at centre tap

    t_ix, h_ix, w_ix = jnp.arange(T), jnp.arange(H), jnp.arange(W)
    masks = []
    for kt in range(3):
        for kh in range(3):
            for kw in range(3):
                mt = (t_ix + (kt - 1) >= 0) & (t_ix + (kt - 1) < T)
                mh = (h_ix + (kh - 1) >= 0) & (h_ix + (kh - 1) < H)
                mw = (w_ix + (kw - 1) >= 0) & (w_ix + (kw - 1) < W)
                masks.append(mt[:, None, None] & mh[None, :, None] & mw[None, None, :])
    mask = jnp.stack(masks, 0).astype(jnp.float32)            # (27, T, H, W)
    w_full = (mask[..., None] * w27[:, None, None, None, :]).reshape(27, R, WC)

    b_lane = jnp.tile(bias.astype(jnp.float32), W).reshape(1, WC)

    x2 = x.reshape(B, R, WC)                                  # lane-dense layout

    kernel = functools.partial(poscnn_kernel, T=T, H=H, W=W, C=C)
    bytes_io = 2 * B * R * WC * x.dtype.itemsize + (27 * R * WC + WC) * 4
    out = pl.pallas_call(
        kernel,
        out_shape=jax.ShapeDtypeStruct((B, R, WC), x.dtype),
        grid=(B,),
        in_specs=[
            pl.BlockSpec((1, R, WC), lambda i: (i, 0, 0)),
            pl.BlockSpec((27, R, WC), lambda i: (0, 0, 0)),   # resident weights
            pl.BlockSpec((1, WC), lambda i: (0, 0)),          # resident bias
        ],
        out_specs=pl.BlockSpec((1, R, WC), lambda i: (i, 0, 0)),
        compiler_params=pltpu.CompilerParams(
            dimension_semantics=("parallel",)),
        cost_estimate=pl.CostEstimate(
            flops=2 * 27 * B * T * H * W * C,
            transcendentals=0,
            bytes_accessed=bytes_io),
    )(x2, w_full, b_lane)
    return out.reshape(B, T, H, W, C)


def pos_cnn_reference(x, weight, bias):
    """Pure-JAX reference mirroring the PyTorch forward exactly."""
    B, T, H, W, C = x.shape
    cnn_feat = jnp.transpose(x, (0, 4, 1, 2, 3))              # (B, C, T, H, W)
    y = lax.conv_general_dilated(
        cnn_feat, weight,
        window_strides=(1, 1, 1),
        padding="SAME",
        feature_group_count=C,                                # depthwise
        dimension_numbers=("NCDHW", "OIDHW", "NCDHW"),
    ) + bias.reshape(1, C, 1, 1, 1)
    y = y + cnn_feat                                          # s == 1 residual
    return jnp.transpose(y, (0, 2, 3, 4, 1))                  # back to (B,T,H,W,C)


if __name__ == "__main__":
    # Small shapes: batch=2, frames=4, spatial=8x8, embed_dim=32 (in_chans=embed_dim).
    B, T, H, W, C = 2, 4, 8, 8, 32
    key = jax.random.PRNGKey(0)
    kx, kw, kb = jax.random.split(key, 3)

    x = jax.random.normal(kx, (B, T, H, W, C), dtype=jnp.float32)
    weight = 0.1 * jax.random.normal(kw, (C, 1, 3, 3, 3), dtype=jnp.float32)
    bias = 0.05 * jax.random.normal(kb, (C,), dtype=jnp.float32)

    out = jax.block_until_ready(pos_cnn_forward(x, weight, bias))
    ref = jax.block_until_ready(pos_cnn_reference(x, weight, bias))
    np.testing.assert_allclose(np.asarray(out), np.asarray(ref),
                               rtol=1e-4, atol=1e-4)
    print("KERNEL_OK")
</pallas_src>

<mosaic_0001>
module attributes {stable_mosaic.version = 11 : i64} {
  func.func @poscnn_kernel(%arg0: i32, %arg1: memref<1x32x256xf32, #tpu.memory_space<vmem>>, %arg2: memref<27x32x256xf32, #tpu.memory_space<vmem>>, %arg3: memref<1x256xf32, #tpu.memory_space<vmem>>, %arg4: memref<1x32x256xf32, #tpu.memory_space<vmem>>) attributes {dimension_semantics = [#tpu.dimension_semantics<parallel>], iteration_bounds = array<i64: 2>, scalar_prefetch = 0 : i64, scratch_operands = 0 : i64, tpu.core_type = #tpu.core_type<tc>, window_params = [{transform_indices = @transform_0, window_bounds = array<i64: 1, 32, 256>}, {pipeline_mode = #tpu.pipeline_mode<synchronous>, transform_indices = @transform_1, window_bounds = array<i64: 27, 32, 256>}, {pipeline_mode = #tpu.pipeline_mode<synchronous>, transform_indices = @transform_2, window_bounds = array<i64: 1, 256>}, {transform_indices = @transform_3, window_bounds = array<i64: 1, 32, 256>}]} {
    %c0 = arith.constant 0 : index
    %c0_0 = arith.constant 0 : index
    %c0_1 = arith.constant 0 : index
    %0 = vector.load %arg1[%c0, %c0_0, %c0_1] : memref<1x32x256xf32, #tpu.memory_space<vmem>>, vector<1x32x256xf32>
    %1 = vector.shape_cast %0 : vector<1x32x256xf32> to vector<32x256xf32>
    %cst = arith.constant 0.000000e+00 : f32
    %2 = vector.broadcast %cst : f32 to vector<32x256xf32>
    %cst_2 = arith.constant 0.000000e+00 : f32
    %3 = vector.broadcast %cst_2 : f32 to vector<32x256xf32>
    %c32_i32 = arith.constant 32 : i32
    %4 = tpu.dynamic_rotate %1 by %c32_i32 dim 1 : vector<32x256xf32>, i32 -> vector<32x256xf32>
    %c9_i32 = arith.constant 9 : i32
    %5 = tpu.dynamic_rotate %4 by %c9_i32 dim 0 : vector<32x256xf32>, i32 -> vector<32x256xf32>
    %c0_3 = arith.constant 0 : index
    %c0_4 = arith.constant 0 : index
    %c0_5 = arith.constant 0 : index
    %6 = vector.load %arg2[%c0_3, %c0_4, %c0_5] : memref<27x32x256xf32, #tpu.memory_space<vmem>>, vector<1x32x256xf32>
    %7 = vector.shape_cast %6 : vector<1x32x256xf32> to vector<32x256xf32>
    %8 = arith.mulf %5, %7 : vector<32x256xf32>
    %9 = arith.addf %2, %8 : vector<32x256xf32>
    %c8_i32 = arith.constant 8 : i32
    %10 = tpu.dynamic_rotate %4 by %c8_i32 dim 0 : vector<32x256xf32>, i32 -> vector<32x256xf32>
    %c3 = arith.constant 3 : index
    %c0_6 = arith.constant 0 : index
    %c0_7 = arith.constant 0 : index
    %11 = vector.load %arg2[%c3, %c0_6, %c0_7] : memref<27x32x256xf32, #tpu.memory_space<vmem>>, vector<1x32x256xf32>
    %12 = vector.shape_cast %11 : vector<1x32x256xf32> to vector<32x256xf32>
    %13 = arith.mulf %10, %12 : vector<32x256xf32>
    %14 = arith.addf %3, %13 : vector<32x256xf32>
    %c7_i32 = arith.constant 7 : i32
    %15 = tpu.dynamic_rotate %4 by %c7_i32 dim 0 : vector<32x256xf32>, i32 -> vector<32x256xf32>
    %c6 = arith.constant 6 : index
    %c0_8 = arith.constant 0 : index
    %c0_9 = arith.constant 0 : index
    %16 = vector.load %arg2[%c6, %c0_8, %c0_9] : memref<27x32x256xf32, #tpu.memory_space<vmem>>, vector<1x32x256xf32>
    %17 = vector.shape_cast %16 : vector<1x32x256xf32> to vector<32x256xf32>
    %18 = arith.mulf %15, %17 : vector<32x256xf32>
    %19 = arith.addf %9, %18 : vector<32x256xf32>
    %c1_i32 = arith.constant 1 : i32
    %20 = tpu.dynamic_rotate %4 by %c1_i32 dim 0 : vector<32x256xf32>, i32 -> vector<32x256xf32>
    %c9 = arith.constant 9 : index
    %c0_10 = arith.constant 0 : index
    %c0_11 = arith.constant 0 : index
    %21 = vector.load %arg2[%c9, %c0_10, %c0_11] : memref<27x32x256xf32, #tpu.memory_space<vmem>>, vector<1x32x256xf32>
    %22 = vector.shape_cast %21 : vector<1x32x256xf32> to vector<32x256xf32>
    %23 = arith.mulf %20, %22 : vector<32x256xf32>
    %24 = arith.addf %14, %23 : vector<32x256xf32>
    %c12 = arith.constant 12 : index
    %c0_12 = arith.constant 0 : index
    %c0_13 = arith.constant 0 : index
    %25 = vector.load %arg2[%c12, %c0_12, %c0_13] : memref<27x32x256xf32, #tpu.memory_space<vmem>>, vector<1x32x256xf32>
    %26 = vector.shape_cast %25 : vector<1x32x256xf32> to vector<32x256xf32>
    %27 = arith.mulf %4, %26 : vector<32x256xf32>
    %28 = arith.addf %19, %27 : vector<32x256xf32>
    %c31_i32 = arith.constant 31 : i32
    %29 = tpu.dynamic_rotate %4 by %c31_i32 dim 0 : vector<32x256xf32>, i32 -> vector<32x256xf32>
    %c15 = arith.constant 15 : index
    %c0_14 = arith.constant 0 : index
    %c0_15 = arith.constant 0 : index
    %30 = vector.load %arg2[%c15, %c0_14, %c0_15] : memref<27x32x256xf32, #tpu.memory_space<vmem>>, vector<1x32x256xf32>
    %31 = vector.shape_cast %30 : vector<1x32x256xf32> to vector<32x256xf32>
    %32 = arith.mulf %29, %31 : vector<32x256xf32>
    %33 = arith.addf %24, %32 : vector<32x256xf32>
    %c25_i32 = arith.constant 25 : i32
    %34 = tpu.dynamic_rotate %4 by %c25_i32 dim 0 : vector<32x256xf32>, i32 -> vector<32x256xf32>
    %c18 = arith.constant 18 : index
    %c0_16 = arith.constant 0 : index
    %c0_17 = arith.constant 0 : index
    %35 = vector.load %arg2[%c18, %c0_16, %c0_17] : memref<27x32x256xf32, #tpu.memory_space<vmem>>, vector<1x32x256xf32>
    %36 = vector.shape_cast %35 : vector<1x32x256xf32> to vector<32x256xf32>
    %37 = arith.mulf %34, %36 : vector<32x256xf32>
    %38 = arith.addf %28, %37 : vector<32x256xf32>
    %c24_i32 = arith.constant 24 : i32
    %39 = tpu.dynamic_rotate %4 by %c24_i32 dim 0 : vector<32x256xf32>, i32 -> vector<32x256xf32>
    %c21 = arith.constant 21 : index
    %c0_18 = arith.constant 0 : index
    %c0_19 = arith.constant 0 : index
    %40 = vector.load %arg2[%c21, %c0_18, %c0_19] : memref<27x32x256xf32, #tpu.memory_space<vmem>>, vector<1x32x256xf32>
    %41 = vector.shape_cast %40 : vector<1x32x256xf32> to vector<32x256xf32>
    %42 = arith.mulf %39, %41 : vector<32x256xf32>
    %43 = arith.addf %33, %42 : vector<32x256xf32>
    %c23_i32 = arith.constant 23 : i32
    %44 = tpu.dynamic_rotate %4 by %c23_i32 dim 0 : vector<32x256xf32>, i32 -> vector<32x256xf32>
    %c24 = arith.constant 24 : index
    %c0_20 = arith.constant 0 : index
    %c0_21 = arith.constant 0 : index
    %45 = vector.load %arg2[%c24, %c0_20, %c0_21] : memref<27x32x256xf32, #tpu.memory_space<vmem>>, vector<1x32x256xf32>
    %46 = vector.shape_cast %45 : vector<1x32x256xf32> to vector<32x256xf32>
    %47 = arith.mulf %44, %46 : vector<32x256xf32>
    %48 = arith.addf %38, %47 : vector<32x256xf32>
    %c9_i32_22 = arith.constant 9 : i32
    %49 = tpu.dynamic_rotate %1 by %c9_i32_22 dim 0 : vector<32x256xf32>, i32 -> vector<32x256xf32>
    %c1 = arith.constant 1 : index
    %c0_23 = arith.constant 0 : index
    %c0_24 = arith.constant 0 : index
    %50 = vector.load %arg2[%c1, %c0_23, %c0_24] : memref<27x32x256xf32, #tpu.memory_space<vmem>>, vector<1x32x256xf32>
    %51 = vector.shape_cast %50 : vector<1x32x256xf32> to vector<32x256xf32>
    %52 = arith.mulf %49, %51 : vector<32x256xf32>
    %53 = arith.addf %43, %52 : vector<32x256xf32>
    %c8_i32_25 = arith.constant 8 : i32
    %54 = tpu.dynamic_rotate %1 by %c8_i32_25 dim 0 : vector<32x256xf32>, i32 -> vector<32x256xf32>
    %c4 = arith.constant 4 : index
    %c0_26 = arith.constant 0 : index
    %c0_27 = arith.constant 0 : index
    %55 = vector.load %arg2[%c4, %c0_26, %c0_27] : memref<27x32x256xf32, #tpu.memory_space<vmem>>, vector<1x32x256xf32>
    %56 = vector.shape_cast %55 : vector<1x32x256xf32> to vector<32x256xf32>
    %57 = arith.mulf %54, %56 : vector<32x256xf32>
    %58 = arith.addf %48, %57 : vector<32x256xf32>
    %c7_i32_28 = arith.constant 7 : i32
    %59 = tpu.dynamic_rotate %1 by %c7_i32_28 dim 0 : vector<32x256xf32>, i32 -> vector<32x256xf32>
    %c7 = arith.constant 7 : index
    %c0_29 = arith.constant 0 : index
    %c0_30 = arith.constant 0 : index
    %60 = vector.load %arg2[%c7, %c0_29, %c0_30] : memref<27x32x256xf32, #tpu.memory_space<vmem>>, vector<1x32x256xf32>
    %61 = vector.shape_cast %60 : vector<1x32x256xf32> to vector<32x256xf32>
    %62 = arith.mulf %59, %61 : vector<32x256xf32>
    %63 = arith.addf %53, %62 : vector<32x256xf32>
    %c1_i32_31 = arith.constant 1 : i32
    %64 = tpu.dynamic_rotate %1 by %c1_i32_31 dim 0 : vector<32x256xf32>, i32 -> vector<32x256xf32>
    %c10 = arith.constant 10 : index
    %c0_32 = arith.constant 0 : index
    %c0_33 = arith.constant 0 : index
    %65 = vector.load %arg2[%c10, %c0_32, %c0_33] : memref<27x32x256xf32, #tpu.memory_space<vmem>>, vector<1x32x256xf32>
    %66 = vector.shape_cast %65 : vector<1x32x256xf32> to vector<32x256xf32>
    %67 = arith.mulf %64, %66 : vector<32x256xf32>
    %68 = arith.addf %58, %67 : vector<32x256xf32>
    %c13 = arith.constant 13 : index
    %c0_34 = arith.constant 0 : index
    %c0_35 = arith.constant 0 : index
    %69 = vector.load %arg2[%c13, %c0_34, %c0_35] : memref<27x32x256xf32, #tpu.memory_space<vmem>>, vector<1x32x256xf32>
    %70 = vector.shape_cast %69 : vector<1x32x256xf32> to vector<32x256xf32>
    %71 = arith.mulf %1, %70 : vector<32x256xf32>
    %72 = arith.addf %63, %71 : vector<32x256xf32>
    %c31_i32_36 = arith.constant 31 : i32
    %73 = tpu.dynamic_rotate %1 by %c31_i32_36 dim 0 : vector<32x256xf32>, i32 -> vector<32x256xf32>
    %c16 = arith.constant 16 : index
    %c0_37 = arith.constant 0 : index
    %c0_38 = arith.constant 0 : index
    %74 = vector.load %arg2[%c16, %c0_37, %c0_38] : memref<27x32x256xf32, #tpu.memory_space<vmem>>, vector<1x32x256xf32>
    %75 = vector.shape_cast %74 : vector<1x32x256xf32> to vector<32x256xf32>
    %76 = arith.mulf %73, %75 : vector<32x256xf32>
    %77 = arith.addf %68, %76 : vector<32x256xf32>
    %c25_i32_39 = arith.constant 25 : i32
    %78 = tpu.dynamic_rotate %1 by %c25_i32_39 dim 0 : vector<32x256xf32>, i32 -> vector<32x256xf32>
    %c19 = arith.constant 19 : index
    %c0_40 = arith.constant 0 : index
    %c0_41 = arith.constant 0 : index
    %79 = vector.load %arg2[%c19, %c0_40, %c0_41] : memref<27x32x256xf32, #tpu.memory_space<vmem>>, vector<1x32x256xf32>
    %80 = vector.shape_cast %79 : vector<1x32x256xf32> to vector<32x256xf32>
    %81 = arith.mulf %78, %80 : vector<32x256xf32>
    %82 = arith.addf %72, %81 : vector<32x256xf32>
    %c24_i32_42 = arith.constant 24 : i32
    %83 = tpu.dynamic_rotate %1 by %c24_i32_42 dim 0 : vector<32x256xf32>, i32 -> vector<32x256xf32>
    %c22 = arith.constant 22 : index
    %c0_43 = arith.constant 0 : index
    %c0_44 = arith.constant 0 : index
    %84 = vector.load %arg2[%c22, %c0_43, %c0_44] : memref<27x32x256xf32, #tpu.memory_space<vmem>>, vector<1x32x256xf32>
    %85 = vector.shape_cast %84 : vector<1x32x256xf32> to vector<32x256xf32>
    %86 = arith.mulf %83, %85 : vector<32x256xf32>
    %87 = arith.addf %77, %86 : vector<32x256xf32>
    %c23_i32_45 = arith.constant 23 : i32
    %88 = tpu.dynamic_rotate %1 by %c23_i32_45 dim 0 : vector<32x256xf32>, i32 -> vector<32x256xf32>
    %c25 = arith.constant 25 : index
    %c0_46 = arith.constant 0 : index
    %c0_47 = arith.constant 0 : index
    %89 = vector.load %arg2[%c25, %c0_46, %c0_47] : memref<27x32x256xf32, #tpu.memory_space<vmem>>, vector<1x32x256xf32>
    %90 = vector.shape_cast %89 : vector<1x32x256xf32> to vector<32x256xf32>
    %91 = arith.mulf %88, %90 : vector<32x256xf32>
    %92 = arith.addf %82, %91 : vector<32x256xf32>
    %c224_i32 = arith.constant 224 : i32
    %93 = tpu.dynamic_rotate %1 by %c224_i32 dim 1 : vector<32x256xf32>, i32 -> vector<32x256xf32>
    %c9_i32_48 = arith.constant 9 : i32
    %94 = tpu.dynamic_rotate %93 by %c9_i32_48 dim 0 : vector<32x256xf32>, i32 -> vector<32x256xf32>
    %c2 = arith.constant 2 : index
    %c0_49 = arith.constant 0 : index
    %c0_50 = arith.constant 0 : index
    %95 = vector.load %arg2[%c2, %c0_49, %c0_50] : memref<27x32x256xf32, #tpu.memory_space<vmem>>, vector<1x32x256xf32>
    %96 = vector.shape_cast %95 : vector<1x32x256xf32> to vector<32x256xf32>
    %97 = arith.mulf %94, %96 : vector<32x256xf32>
    %98 = arith.addf %87, %97 : vector<32x256xf32>
    %c8_i32_51 = arith.constant 8 : i32
    %99 = tpu.dynamic_rotate %93 by %c8_i32_51 dim 0 : vector<32x256xf32>, i32 -> vector<32x256xf32>
    %c5 = arith.constant 5 : index
    %c0_52 = arith.constant 0 : index
    %c0_53 = arith.constant 0 : index
    %100 = vector.load %arg2[%c5, %c0_52, %c0_53] : memref<27x32x256xf32, #tpu.memory_space<vmem>>, vector<1x32x256xf32>
    %101 = vector.shape_cast %100 : vector<1x32x256xf32> to vector<32x256xf32>
    %102 = arith.mulf %99, %101 : vector<32x256xf32>
    %103 = arith.addf %92, %102 : vector<32x256xf32>
    %c7_i32_54 = arith.constant 7 : i32
    %104 = tpu.dynamic_rotate %93 by %c7_i32_54 dim 0 : vector<32x256xf32>, i32 -> vector<32x256xf32>
    %c8 = arith.constant 8 : index
    %c0_55 = arith.constant 0 : index
    %c0_56 = arith.constant 0 : index
    %105 = vector.load %arg2[%c8, %c0_55, %c0_56] : memref<27x32x256xf32, #tpu.memory_space<vmem>>, vector<1x32x256xf32>
    %106 = vector.shape_cast %105 : vector<1x32x256xf32> to vector<32x256xf32>
    %107 = arith.mulf %104, %106 : vector<32x256xf32>
    %108 = arith.addf %98, %107 : vector<32x256xf32>
    %c1_i32_57 = arith.constant 1 : i32
    %109 = tpu.dynamic_rotate %93 by %c1_i32_57 dim 0 : vector<32x256xf32>, i32 -> vector<32x256xf32>
    %c11 = arith.constant 11 : index
    %c0_58 = arith.constant 0 : index
    %c0_59 = arith.constant 0 : index
    %110 = vector.load %arg2[%c11, %c0_58, %c0_59] : memref<27x32x256xf32, #tpu.memory_space<vmem>>, vector<1x32x256xf32>
    %111 = vector.shape_cast %110 : vector<1x32x256xf32> to vector<32x256xf32>
    %112 = arith.mulf %109, %111 : vector<32x256xf32>
    %113 = arith.addf %103, %112 : vector<32x256xf32>
    %c14 = arith.constant 14 : index
    %c0_60 = arith.constant 0 : index
    %c0_61 = arith.constant 0 : index
    %114 = vector.load %arg2[%c14, %c0_60, %c0_61] : memref<27x32x256xf32, #tpu.memory_space<vmem>>, vector<1x32x256xf32>
    %115 = vector.shape_cast %114 : vector<1x32x256xf32> to vector<32x256xf32>
    %116 = arith.mulf %93, %115 : vector<32x256xf32>
    %117 = arith.addf %108, %116 : vector<32x256xf32>
    %c31_i32_62 = arith.constant 31 : i32
    %118 = tpu.dynamic_rotate %93 by %c31_i32_62 dim 0 : vector<32x256xf32>, i32 -> vector<32x256xf32>
    %c17 = arith.constant 17 : index
    %c0_63 = arith.constant 0 : index
    %c0_64 = arith.constant 0 : index
    %119 = vector.load %arg2[%c17, %c0_63, %c0_64] : memref<27x32x256xf32, #tpu.memory_space<vmem>>, vector<1x32x256xf32>
    %120 = vector.shape_cast %119 : vector<1x32x256xf32> to vector<32x256xf32>
    %121 = arith.mulf %118, %120 : vector<32x256xf32>
    %122 = arith.addf %113, %121 : vector<32x256xf32>
    %c25_i32_65 = arith.constant 25 : i32
    %123 = tpu.dynamic_rotate %93 by %c25_i32_65 dim 0 : vector<32x256xf32>, i32 -> vector<32x256xf32>
    %c20 = arith.constant 20 : index
    %c0_66 = arith.constant 0 : index
    %c0_67 = arith.constant 0 : index
    %124 = vector.load %arg2[%c20, %c0_66, %c0_67] : memref<27x32x256xf32, #tpu.memory_space<vmem>>, vector<1x32x256xf32>
    %125 = vector.shape_cast %124 : vector<1x32x256xf32> to vector<32x256xf32>
    %126 = arith.mulf %123, %125 : vector<32x256xf32>
    %127 = arith.addf %117, %126 : vector<32x256xf32>
    %c24_i32_68 = arith.constant 24 : i32
    %128 = tpu.dynamic_rotate %93 by %c24_i32_68 dim 0 : vector<32x256xf32>, i32 -> vector<32x256xf32>
    %c23 = arith.constant 23 : index
    %c0_69 = arith.constant 0 : index
    %c0_70 = arith.constant 0 : index
    %129 = vector.load %arg2[%c23, %c0_69, %c0_70] : memref<27x32x256xf32, #tpu.memory_space<vmem>>, vector<1x32x256xf32>
    %130 = vector.shape_cast %129 : vector<1x32x256xf32> to vector<32x256xf32>
    %131 = arith.mulf %128, %130 : vector<32x256xf32>
    %132 = arith.addf %122, %131 : vector<32x256xf32>
    %c23_i32_71 = arith.constant 23 : i32
    %133 = tpu.dynamic_rotate %93 by %c23_i32_71 dim 0 : vector<32x256xf32>, i32 -> vector<32x256xf32>
    %c26 = arith.constant 26 : index
    %c0_72 = arith.constant 0 : index
    %c0_73 = arith.constant 0 : index
    %134 = vector.load %arg2[%c26, %c0_72, %c0_73] : memref<27x32x256xf32, #tpu.memory_space<vmem>>, vector<1x32x256xf32>
    %135 = vector.shape_cast %134 : vector<1x32x256xf32> to vector<32x256xf32>
    %136 = arith.mulf %133, %135 : vector<32x256xf32>
    %137 = arith.addf %127, %136 : vector<32x256xf32>
    %c0_74 = arith.constant 0 : index
    %c0_75 = arith.constant 0 : index
    %138 = vector.load %arg3[%c0_74, %c0_75] : memref<1x256xf32, #tpu.memory_space<vmem>>, vector<1x256xf32>
    %139 = vector.broadcast %138 : vector<1x256xf32> to vector<32x256xf32>
    %140 = arith.addf %132, %139 : vector<32x256xf32>
    %141 = arith.addf %137, %140 : vector<32x256xf32>
    %c0_76 = arith.constant 0 : index
    %c0_77 = arith.constant 0 : index
    %c0_78 = arith.constant 0 : index
    %142 = vector.load %arg4[%c0_76, %c0_77, %c0_78] : memref<1x32x256xf32, #tpu.memory_space<vmem>>, vector<1x32x256xf32>
    %143 = vector.shape_cast %142 : vector<1x32x256xf32> to vector<32x256xf32>
    %144 = vector.shape_cast %141 : vector<32x256xf32> to vector<1x32x256xf32>
    tpu.vector_store %arg4[%c0_76, %c0_77, %c0_78], %144 {strides = array<i32>} : memref<1x32x256xf32, #tpu.memory_space<vmem>>, vector<1x32x256xf32>,
    return
  }
  func.func @transform_0(%arg0: i32) -> (i32, i32, i32) {
    %c0_i32 = arith.constant 0 : i32
    %c0_i32_0 = arith.constant 0 : i32
    %c0_i32_1 = arith.constant 0 : i32
    return %arg0, %c0_i32, %c0_i32_0 : i32, i32, i32
  }
  func.func @transform_1(%arg0: i32) -> (i32, i32, i32) {
    %c0_i32 = arith.constant 0 : i32
    %c0_i32_0 = arith.constant 0 : i32
    %c0_i32_1 = arith.constant 0 : i32
    %c0_i32_2 = arith.constant 0 : i32
    return %c0_i32, %c0_i32_0, %c0_i32_1 : i32, i32, i32
  }
  func.func @transform_2(%arg0: i32) -> (i32, i32) {
    %c0_i32 = arith.constant 0 : i32
    %c0_i32_0 = arith.constant 0 : i32
    %c0_i32_1 = arith.constant 0 : i32
    return %c0_i32, %c0_i32_0 : i32, i32
  }
  func.func @transform_3(%arg0: i32) -> (i32, i32, i32) {
    %c0_i32 = arith.constant 0 : i32
    %c0_i32_0 = arith.constant 0 : i32
    %c0_i32_1 = arith.constant 0 : i32
    return %arg0, %c0_i32, %c0_i32_0 : i32, i32, i32
  }
}

</mosaic_0001>

<llo_original>
// kernel: tpu_custom_call.1
$region0: #{tpu_custom_call.1}
  #allocation0 [shape = 'u32[]', space=smem, size = 0x4, offset = 0x4, fixed_abs, tag = 'smem constant byte address 0x4 - core index']
  #allocation1 [shape = 'u32[144,128]{1,0:T(1,128)}', space=vmem, size = 0x12000, scoped, tag = 'internal scratch']
  %s0 = inlined_call_operand.hbm [shape: f32[2,32,256], index: 0, kind: input, shape index: {}]
  %s1 = inlined_call_operand.hbm [shape: f32[27,32,256], index: 1, kind: input, shape index: {}]
  %s2 = inlined_call_operand.vmem [shape: f32[1,256], index: 2, kind: input, shape index: {}]
  %s3 = inlined_call_operand.hbm [shape: f32[2,32,256], index: 3, kind: output, shape index: {}]
  %s4 = sld [smem:[#allocation0]]
  $region53: #{tpu_custom_call.1} parent=0
    _
  %s6 = ssub.s32 1, %s4
  %s7 = scalar_select 0, %s6, %s4
  $region1: #{tpu_custom_call.1} parent=0
    #allocation2 [shape = 'u8[65536]{0}', space=vmem, size = 0x10000, scoped, tag = 'input window, operand 0']
    #allocation3 [shape = 's32[2]{0}', space=sflag, size = 0x8, scoped, tag = 'scoped memory for tpu_custom_call.1']
    #allocation4 [shape = 's32[2]{0}', space=sflag, size = 0x8, scoped, tag = 'scoped memory for tpu_custom_call.1']
    #allocation5 [shape = 'u8[884736]{0}', space=vmem, size = 0xd8000, scoped, tag = 'input window, operand 1, single buffered']
    #allocation6 [shape = 's32[1]{0}', space=sflag, size = 0x4, scoped, tag = 'scoped memory for tpu_custom_call.1']
    #allocation7 [shape = 'u8[65536]{0}', space=vmem, size = 0x10000, scoped, tag = 'output window, operand 0']
    %8 = vsyncpa [#allocation3], 0
    %s9 = scalar_lea.sflag [#allocation3], 1
    %10 = vsyncpa %s9, 0
    %11 = vsyncpa [#allocation6], 0
    %12 = vsyncpa [#allocation4], 0
    %s13 = scalar_lea.sflag [#allocation4], 1
    %14 = vsyncpa %s13, 0
    loop: start=0, step=1, limit=4
    $region2: #{tpu_custom_call.1} parent=1 // loop_pre_header
      _
    $region3: #{tpu_custom_call.1} parent=1 // loop_header
      %s16 = sphi 0, %s20
      %p17 = scmp.ge.s32.totalorder %s16, 4
      %s26 = sphi 0, %s28
      %s29 = sphi 0, %s26
      %s30 = sphi 0, %s29
      %s46 = sphi 0, %s30
      %s50 = sphi 0, %s50
      %s52 = sphi 0, %s50
      %s53 = sphi 0, %s52
      %s67 = sphi 0, %s53
      %s71 = sphi 0, %s71
      %s73 = sphi 0, %s71
      %s74 = sphi 0, %s73
      %s88 = sphi 0, %s74
      %s94 = sphi 0, %s96
      %s97 = sphi 0, %s94
      %s98 = sphi 0, %s97
      %s114 = sphi 0, %s98
    $region4: #{tpu_custom_call.1} parent=1 // loop_header_branch
      %19 = sbr.rel (%p17) target = $region8
    $region5: #{tpu_custom_call.1} parent=1 // loop_body
      %s21 = ssub.s32 %s16, 1
      %s22 = ssub.s32 %s16, 2
      %s23 = sadd.s32 %s16, 1
      %s24 = ssub.s32 %s16, %s23
      %p25 = scmp.eq.s32.totalorder %s24, 0
      %s27 = sadd.s32 %s26, 1
      %s28 = scalar_select %p25, %s26, %s27
      %p31 = pneg %p25
      %p32 = scmp.eq.s32.totalorder %s16, 1
      %p33 = por %p31, %p32
      %p34 = scmp.ne.s32.totalorder %s26, %s29
      %p35 = scmp.eq.s32.totalorder %s16, 0
      %p36 = por %p34, %p35
      %p37 = scmp.ne.s32.totalorder %s26, %s29
      %p38 = scmp.eq.s32.totalorder %s21, 1
      %p39 = por %p37, %p38
      %p40 = scmp.ne.s32.totalorder %s29, %s30
      %p41 = scmp.eq.s32.totalorder %s21, 0
      %p42 = por %p40, %p41
      %p43 = scmp.ne.s32.totalorder %s29, %s30
      %p44 = scmp.eq.s32.totalorder %s22, 1
      %p45 = por %p43, %p44
      %p47 = scmp.ne.s32.totalorder %s30, %s46
      %p48 = scmp.eq.s32.totalorder %s22, 0
      %p49 = por %p47, %p48
      %s51 = sadd.s32 %s50, 1
      %p54 = scmp.eq.s32.totalorder %s16, 1
      %p55 = scmp.ne.s32.totalorder %s50, %s52
      %p56 = scmp.eq.s32.totalorder %s16, 0
      %p57 = por %p55, %p56
      %p58 = scmp.ne.s32.totalorder %s50, %s52
      %p59 = scmp.eq.s32.totalorder %s21, 1
      %p60 = por %p58, %p59
      %p61 = scmp.ne.s32.totalorder %s52, %s53
      %p62 = scmp.eq.s32.totalorder %s21, 0
      %p63 = por %p61, %p62
      %p64 = scmp.ne.s32.totalorder %s52, %s53
      %p65 = scmp.eq.s32.totalorder %s22, 1
      %p66 = por %p64, %p65
      %p68 = scmp.ne.s32.totalorder %s53, %s67
      %p69 = scmp.eq.s32.totalorder %s22, 0
      %p70 = por %p68, %p69
      %s72 = sadd.s32 %s71, 1
      %p75 = scmp.eq.s32.totalorder %s16, 1
      %p76 = scmp.ne.s32.totalorder %s71, %s73
      %p77 = scmp.eq.s32.totalorder %s16, 0
      %p78 = por %p76, %p77
      %p79 = scmp.ne.s32.totalorder %s71, %s73
      %p80 = scmp.eq.s32.totalorder %s21, 1
      %p81 = por %p79, %p80
      %p82 = scmp.ne.s32.totalorder %s73, %s74
      %p83 = scmp.eq.s32.totalorder %s21, 0
      %p84 = por %p82, %p83
      %p85 = scmp.ne.s32.totalorder %s73, %s74
      %p86 = scmp.eq.s32.totalorder %s22, 1
      %p87 = por %p85, %p86
      %p89 = scmp.ne.s32.totalorder %s74, %s88
      %p90 = scmp.eq.s32.totalorder %s22, 0
      %p91 = por %p89, %p90
      %s92 = ssub.s32 %s16, %s23
      %p93 = scmp.eq.s32.totalorder %s92, 0
      %s95 = sadd.s32 %s94, 1
      %s96 = scalar_select %p93, %s94, %s95
      %p99 = pneg %p93
      %p100 = scmp.eq.s32.totalorder %s16, 1
      %p101 = por %p99, %p100
      %p102 = scmp.ne.s32.totalorder %s94, %s97
      %p103 = scmp.eq.s32.totalorder %s16, 0
      %p104 = por %p102, %p103
      %p105 = scmp.ne.s32.totalorder %s94, %s97
      %p106 = scmp.eq.s32.totalorder %s21, 1
      %p107 = por %p105, %p106
      %p108 = scmp.ne.s32.totalorder %s97, %s98
      %p109 = scmp.eq.s32.totalorder %s21, 0
      %p110 = por %p108, %p109
      %p111 = scmp.ne.s32.totalorder %s97, %s98
      %p112 = scmp.eq.s32.totalorder %s22, 1
      %p113 = por %p111, %p112
      %p115 = scmp.ne.s32.totalorder %s98, %s114
      %p116 = scmp.eq.s32.totalorder %s22, 0
      %p117 = por %p115, %p116
      %p118 = scmp.le.s32.totalorder 1, %s16
      %p119 = scmp.lt.s32.totalorder %s16, 3
      %p120 = pnand %p118, %p119
      %p121 = pneg %p120
      // Predicated region
      $region9: #{tpu_custom_call.1} parent=5 // pred_check
        _
      $region10: #{tpu_custom_call.1} parent=5 // pred_check_branch
        %123 = sbr.rel (%p120) target = $region12
      $region11: #{tpu_custom_call.1} parent=5 // pred_region
        %s124 = ssub.s32 %s16, 1
        // Predicated region
        $region13: #{tpu_custom_call.1} parent=11 // pred_check
          %p125 = pneg %p63
        $region14: #{tpu_custom_call.1} parent=11 // pred_check_branch
          %127 = sbr.rel (%p125) target = $region16
        $region15: #{tpu_custom_call.1} parent=11 // pred_region
          %s129 = ssub.s32 27648, 27648
          %130 = vsyncadd [#allocation6], %s129
          %s131 = sshll.u32 [#allocation5], 4
          %s132 = int_to_ptr.vmem [resolvable:$true] %s131
          %137 = dma.hbm_to_vmem [thread:$0]  %s1, 27648, %s132, [#allocation6], 256, 256, 16
        $region16: #{tpu_custom_call.1} parent=11 // pred_fallthru
          _
        // Predicated region
        $region17: #{tpu_custom_call.1} parent=11 // pred_check
          %p138 = pneg %p84
        $region18: #{tpu_custom_call.1} parent=11 // pred_check_branch
          %140 = sbr.rel (%p138) target = $region20
        $region19: #{tpu_custom_call.1} parent=11 // pred_region
          _
        $region20: #{tpu_custom_call.1} parent=11 // pred_fallthru
          _
      $region12: #{tpu_custom_call.1} parent=5 // pred_fallthru
        _
      %p141 = scmp.lt.s32.totalorder %s16, 2
      // Predicated region
      $region21: #{tpu_custom_call.1} parent=5 // pred_check
        %p142 = pneg %p141
      $region22: #{tpu_custom_call.1} parent=5 // pred_check_branch
        %144 = sbr.rel (%p142) target = $region24
      $region23: #{tpu_custom_call.1} parent=5 // pred_region
        // Predicated region
        $region25: #{tpu_custom_call.1} parent=23 // pred_check
          %p145 = pneg %p36
        $region26: #{tpu_custom_call.1} parent=23 // pred_check_branch
          %147 = sbr.rel (%p145) target = $region28
        $region27: #{tpu_custom_call.1} parent=23 // pred_region
          %s148 = sand.u32 %s26, 1
          %s149 = scalar_lea.sflag [#allocation3], %s148
          %s150 = sand.u32 %s26, 1
          %s151 = smul.addr %s150, 64
          %s152 = scalar_lea.vmem [#allocation2], %s151
          %s154 = ssub.s32 1024, 1024
          %155 = vsyncadd %s149, %s154
          %s156 = smul.addr %s16, 8
          %s157 = smul.addr %s156, 128
          %s158 = scalar_lea.hbm %s0, %s157
          %s159 = sshll.u32 %s152, 4
          %s160 = int_to_ptr.vmem [resolvable:$true] %s159
          %165 = dma.hbm_to_vmem [thread:$0]  %s158, 1024, %s160, %s149, 256, 256, 16
        $region28: #{tpu_custom_call.1} parent=23 // pred_fallthru
          _
      $region24: #{tpu_custom_call.1} parent=5 // pred_fallthru
        _
      %p166 = scmp.le.s32.totalorder 1, %s16
      %p167 = scmp.lt.s32.totalorder %s16, 3
      %p168 = pnand %p166, %p167
      %p169 = pneg %p168
      // Predicated region
      $region29: #{tpu_custom_call.1} parent=5 // pred_check
        _
      $region30: #{tpu_custom_call.1} parent=5 // pred_check_branch
        %171 = sbr.rel (%p168) target = $region32
      $region31: #{tpu_custom_call.1} parent=5 // pred_region
        %s172 = ssub.s32 %s16, 1
        %s173 = sand.u32 %s29, 1
        %s174 = scalar_lea.sflag [#allocation3], %s173
        %s175 = sand.u32 %s29, 1
        %s176 = smul.addr %s175, 64
        %s177 = scalar_lea.vmem [#allocation2], %s176
        // Predicated region
        $region33: #{tpu_custom_call.1} parent=31 // pred_check
          %p178 = pneg %p42
        $region34: #{tpu_custom_call.1} parent=31 // pred_check_branch
          %180 = sbr.rel (%p178) target = $region36
        $region35: #{tpu_custom_call.1} parent=31 // pred_region
          %181 = dma.done %s174, 1024
        $region36: #{tpu_custom_call.1} parent=31 // pred_fallthru
          _
        // Predicated region
        $region37: #{tpu_custom_call.1} parent=31 // pred_check
          %p182 = pneg %p63
        $region38: #{tpu_custom_call.1} parent=31 // pred_check_branch
          %184 = sbr.rel (%p182) target = $region40
        $region39: #{tpu_custom_call.1} parent=31 // pred_region
          %185 = dma.done [#allocation6], 27648
        $region40: #{tpu_custom_call.1} parent=31 // pred_fallthru
          _
        %s186 = sand.u32 %s29, 1
        %s187 = scalar_lea.sflag [#allocation3], %s186
        %s188 = sand.u32 %s29, 1
        %s189 = smul.addr %s188, 64
        %s190 = scalar_lea.vmem [#allocation2], %s189
        %p191 = pneg %p42
        %p192 = pneg %p39
        %p193 = pneg %p63
        %p194 = pneg %p60
        %p195 = pneg %p84
        %p196 = pneg %p81
        %p197 = pneg %p110
        %p198 = pneg %p107
        %s199 = sand.u32 %s97, 1
        %s200 = scalar_lea.sflag [#allocation4], %s199
        %s201 = sand.u32 %s97, 1
        %s202 = smul.addr %s201, 64
        %s203 = scalar_lea.vmem [#allocation7], %s202
        %v204 = vld [vmem:[%s177] sm:$0xff]
        %v205 = vld [vmem:[%s177 + $0x8] sm:$0xff]
        %v206 = vld [vmem:[%s177 + $0x10] sm:$0xff]
        %v207 = vld [vmem:[%s177 + $0x18] sm:$0xff]
        %v208 = vld [vmem:[%s177 + $0x20] sm:$0xff]
        %v209 = vld [vmem:[%s177 + $0x28] sm:$0xff]
        %v210 = vld [vmem:[%s177 + $0x30] sm:$0xff]
        %v211 = vld [vmem:[%s177 + $0x38] sm:$0xff]
        %212 = vrot.lane.b32.xlu0 %v204, 32
        %v213 = vpop.permute.xlu0 %212
        %214 = vrot.lane.b32.xlu0 %v206, 32
        %v215 = vpop.permute.xlu0 %214
        %216 = vrot.lane.b32.xlu0 %v208, 32
        %v217 = vpop.permute.xlu0 %216
        %218 = vrot.lane.b32.xlu0 %v210, 32
        %v219 = vpop.permute.xlu0 %218
        %220 = vrot.lane.b32.xlu0 %v205, 32
        %v221 = vpop.permute.xlu0 %220
        %222 = vrot.lane.b32.xlu0 %v207, 32
        %v223 = vpop.permute.xlu0 %222
        %224 = vrot.lane.b32.xlu0 %v209, 32
        %v225 = vpop.permute.xlu0 %224
        %226 = vrot.lane.b32.xlu0 %v211, 32
        %v227 = vpop.permute.xlu0 %226
        %v228 = vlaneseq
        %v229 = vand.u32 %v228, 127
        %vm230 = vcmp.lt.s32.totalorder %v229, 32
        %v231 = vsel %vm230, %v213, %v221
        %v232 = vsel %vm230, %v215, %v223
        %v233 = vsel %vm230, %v217, %v225
        %v234 = vsel %vm230, %v219, %v227
        %v235 = vsel %vm230, %v221, %v213
        %v236 = vsel %vm230, %v223, %v215
        %v237 = vsel %vm230, %v225, %v217
        %v238 = vsel %vm230, %v227, %v219
        %v239 = vrot.slane %v235, 7
        %v240 = vrot.slane %v231, 7
        %v241 = vrot.slane %v236, 7
        %v242 = vrot.slane %v232, 7
        %v243 = vrot.slane %v237, 7
        %v244 = vrot.slane %v233, 7
        %v245 = vrot.slane %v238, 7
        %v246 = vrot.slane %v234, 7
        %v247 = vlaneseq
        %v248 = vshrl.u32 %v247, 7
        %vm249 = vcmp.lt.s32.totalorder %v248, 1
        %v250 = vsel %vm249, %v243, %v245
        %v251 = vsel %vm249, %v244, %v246
        %v252 = vsel %vm249, %v241, %v243
        %v253 = vsel %vm249, %v242, %v244
        %v254 = vsel %vm249, %v239, %v241
        %v255 = vsel %vm249, %v240, %v242
        %v256 = vsel %vm249, %v245, %v239
        %v257 = vsel %vm249, %v246, %v240
        %v258 = vld [vmem:[#allocation5] sm:$0xff]
        %v259 = vld [vmem:[#allocation5 + $0x8] sm:$0xff]
        %v260 = vld [vmem:[#allocation5 + $0x10] sm:$0xff]
        %v261 = vld [vmem:[#allocation5 + $0x18] sm:$0xff]
        %v262 = vld [vmem:[#allocation5 + $0x20] sm:$0xff]
        %v263 = vld [vmem:[#allocation5 + $0x28] sm:$0xff]
        %v264 = vld [vmem:[#allocation5 + $0x30] sm:$0xff]
        %v265 = vld [vmem:[#allocation5 + $0x38] sm:$0xff]
        %v266 = vmul.f32 %v250, %v258
        %v267 = vmul.f32 %v251, %v259
        %v268 = vmul.f32 %v256, %v260
        %v269 = vmul.f32 %v257, %v261
        %v270 = vmul.f32 %v254, %v262
        %v271 = vmul.f32 %v255, %v263
        %v272 = vmul.f32 %v252, %v264
        %v273 = vmul.f32 %v253, %v265
        %v274 = vadd.f32 %v266, 0.0
        %v275 = vadd.f32 %v267, 0.0
        %v276 = vadd.f32 %v268, 0.0
        %v277 = vadd.f32 %v269, 0.0
        %v278 = vadd.f32 %v270, 0.0
        %v279 = vadd.f32 %v271, 0.0
        %v280 = vadd.f32 %v272, 0.0
        %v281 = vadd.f32 %v273, 0.0
        %s282 = scalar_lea.vmem [#allocation5], 192
        %v283 = vld [vmem:[%s282] sm:$0xff]
        %v284 = vld [vmem:[%s282 + $0x8] sm:$0xff]
        %v285 = vld [vmem:[%s282 + $0x10] sm:$0xff]
        %v286 = vld [vmem:[%s282 + $0x18] sm:$0xff]
        %v287 = vld [vmem:[%s282 + $0x20] sm:$0xff]
        %v288 = vld [vmem:[%s282 + $0x28] sm:$0xff]
        %v289 = vld [vmem:[%s282 + $0x30] sm:$0xff]
        %v290 = vld [vmem:[%s282 + $0x38] sm:$0xff]
        %v291 = vmul.f32 %v238, %v283
        %v292 = vmul.f32 %v234, %v284
        %v293 = vmul.f32 %v235, %v285
        %v294 = vmul.f32 %v231, %v286
        %v295 = vmul.f32 %v236, %v287
        %v296 = vmul.f32 %v232, %v288
        %v297 = vmul.f32 %v237, %v289
        %v298 = vmul.f32 %v233, %v290
        %v299 = vadd.f32 %v291, 0.0
        %v300 = vadd.f32 %v292, 0.0
        %v301 = vadd.f32 %v293, 0.0
        %v302 = vadd.f32 %v294, 0.0
        %v303 = vadd.f32 %v295, 0.0
        %v304 = vadd.f32 %v296, 0.0
        %v305 = vadd.f32 %v297, 0.0
        %v306 = vadd.f32 %v298, 0.0
        %v307 = vrot.slane %v235, 1
        %v308 = vrot.slane %v231, 1
        %v309 = vrot.slane %v236, 1
        %v310 = vrot.slane %v232, 1
        %v311 = vrot.slane %v237, 1
        %v312 = vrot.slane %v233, 1
        %v313 = vrot.slane %v238, 1
        %v314 = vrot.slane %v234, 1
        %vm315 = vcmp.lt.s32.totalorder %v248, 7
        %v316 = vsel %vm315, %v311, %v313
        %v317 = vsel %vm315, %v312, %v314
        %v318 = vsel %vm315, %v309, %v311
        %v319 = vsel %vm315, %v310, %v312
        %v320 = vsel %vm315, %v307, %v309
        %v321 = vsel %vm315, %v308, %v310
        %v322 = vsel %vm315, %v313, %v307
        %v323 = vsel %vm315, %v314, %v308
        %s324 = scalar_lea.vmem [#allocation5], 384
        %v325 = vld [vmem:[%s324] sm:$0xff]
        %v326 = vld [vmem:[%s324 + $0x8] sm:$0xff]
        %v327 = vld [vmem:[%s324 + $0x10] sm:$0xff]
        %v328 = vld [vmem:[%s324 + $0x18] sm:$0xff]
        %v329 = vld [vmem:[%s324 + $0x20] sm:$0xff]
        %v330 = vld [vmem:[%s324 + $0x28] sm:$0xff]
        %v331 = vld [vmem:[%s324 + $0x30] sm:$0xff]
        %v332 = vld [vmem:[%s324 + $0x38] sm:$0xff]
        %v333 = vmul.f32 %v322, %v325
        %v334 = vmul.f32 %v323, %v326
        %v335 = vmul.f32 %v320, %v327
        %v336 = vmul.f32 %v321, %v328
        %v337 = vmul.f32 %v318, %v329
        %v338 = vmul.f32 %v319, %v330
        %v339 = vmul.f32 %v316, %v331
        %v340 = vmul.f32 %v317, %v332
        %v341 = vadd.f32 %v274, %v333
        %v342 = vadd.f32 %v275, %v334
        %v343 = vadd.f32 %v276, %v335
        %v344 = vadd.f32 %v277, %v336
        %v345 = vadd.f32 %v278, %v337
        %v346 = vadd.f32 %v279, %v338
        %v347 = vadd.f32 %v280, %v339
        %v348 = vadd.f32 %v281, %v340
        %s349 = scalar_lea.vmem [#allocation5], 576
        %v350 = vld [vmem:[%s349] sm:$0xff]
        %v351 = vld [vmem:[%s349 + $0x8] sm:$0xff]
        %v352 = vld [vmem:[%s349 + $0x10] sm:$0xff]
        %v353 = vld [vmem:[%s349 + $0x18] sm:$0xff]
        %v354 = vld [vmem:[%s349 + $0x20] sm:$0xff]
        %v355 = vld [vmem:[%s349 + $0x28] sm:$0xff]
        %v356 = vld [vmem:[%s349 + $0x30] sm:$0xff]
        %v357 = vld [vmem:[%s349 + $0x38] sm:$0xff]
        %v358 = vmul.f32 %v256, %v350
        %v359 = vmul.f32 %v257, %v351
        %v360 = vmul.f32 %v254, %v352
        %v361 = vmul.f32 %v255, %v353
        %v362 = vmul.f32 %v252, %v354
        %v363 = vmul.f32 %v253, %v355
        %v364 = vmul.f32 %v250, %v356
        %v365 = vmul.f32 %v251, %v357
        %v366 = vadd.f32 %v299, %v358
        %v367 = vadd.f32 %v300, %v359
        %v368 = vadd.f32 %v301, %v360
        %v369 = vadd.f32 %v302, %v361
        %v370 = vadd.f32 %v303, %v362
        %v371 = vadd.f32 %v304, %v363
        %v372 = vadd.f32 %v305, %v364
        %v373 = vadd.f32 %v306, %v365
        %s374 = scalar_lea.vmem [#allocation5], 768
        %v375 = vld [vmem:[%s374] sm:$0xff]
        %v376 = vld [vmem:[%s374 + $0x8] sm:$0xff]
        %v377 = vld [vmem:[%s374 + $0x10] sm:$0xff]
        %v378 = vld [vmem:[%s374 + $0x18] sm:$0xff]
        %v379 = vld [vmem:[%s374 + $0x20] sm:$0xff]
        %v380 = vld [vmem:[%s374 + $0x28] sm:$0xff]
        %v381 = vld [vmem:[%s374 + $0x30] sm:$0xff]
        %v382 = vld [vmem:[%s374 + $0x38] sm:$0xff]
        %v383 = vmul.f32 %v235, %v375
        %v384 = vmul.f32 %v231, %v376
        %v385 = vmul.f32 %v236, %v377
        %v386 = vmul.f32 %v232, %v378
        %v387 = vmul.f32 %v237, %v379
        %v388 = vmul.f32 %v233, %v380
        %v389 = vmul.f32 %v238, %v381
        %v390 = vmul.f32 %v234, %v382
        %v391 = vadd.f32 %v341, %v383
        %v392 = vadd.f32 %v342, %v384
        %v393 = vadd.f32 %v343, %v385
        %v394 = vadd.f32 %v344, %v386
        %v395 = vadd.f32 %v345, %v387
        %v396 = vadd.f32 %v346, %v388
        %v397 = vadd.f32 %v347, %v389
        %v398 = vadd.f32 %v348, %v390
        %s399 = scalar_lea.vmem [#allocation5], 960
        %v400 = vld [vmem:[%s399] sm:$0xff]
        %v401 = vld [vmem:[%s399 + $0x8] sm:$0xff]
        %v402 = vld [vmem:[%s399 + $0x10] sm:$0xff]
        %v403 = vld [vmem:[%s399 + $0x18] sm:$0xff]
        %v404 = vld [vmem:[%s399 + $0x20] sm:$0xff]
        %v405 = vld [vmem:[%s399 + $0x28] sm:$0xff]
        %v406 = vld [vmem:[%s399 + $0x30] sm:$0xff]
        %v407 = vld [vmem:[%s399 + $0x38] sm:$0xff]
        %v408 = vmul.f32 %v320, %v400
        %v409 = vmul.f32 %v321, %v401
        %v410 = vmul.f32 %v318, %v402
        %v411 = vmul.f32 %v319, %v403
        %v412 = vmul.f32 %v316, %v404
        %v413 = vmul.f32 %v317, %v405
        %v414 = vmul.f32 %v322, %v406
        %v415 = vmul.f32 %v323, %v407
        %v416 = vadd.f32 %v366, %v408
        %v417 = vadd.f32 %v367, %v409
        %v418 = vadd.f32 %v368, %v410
        %v419 = vadd.f32 %v369, %v411
        %v420 = vadd.f32 %v370, %v412
        %v421 = vadd.f32 %v371, %v413
        %v422 = vadd.f32 %v372, %v414
        %v423 = vadd.f32 %v373, %v415
        %s424 = scalar_lea.vmem [#allocation5], 1152
        %v425 = vld [vmem:[%s424] sm:$0xff]
        %v426 = vld [vmem:[%s424 + $0x8] sm:$0xff]
        %v427 = vld [vmem:[%s424 + $0x10] sm:$0xff]
        %v428 = vld [vmem:[%s424 + $0x18] sm:$0xff]
        %v429 = vld [vmem:[%s424 + $0x20] sm:$0xff]
        %v430 = vld [vmem:[%s424 + $0x28] sm:$0xff]
        %v431 = vld [vmem:[%s424 + $0x30] sm:$0xff]
        %v432 = vld [vmem:[%s424 + $0x38] sm:$0xff]
        %v433 = vmul.f32 %v254, %v425
        %v434 = vmul.f32 %v255, %v426
        %v435 = vmul.f32 %v252, %v427
        %v436 = vmul.f32 %v253, %v428
        %v437 = vmul.f32 %v250, %v429
        %v438 = vmul.f32 %v251, %v430
        %v439 = vmul.f32 %v256, %v431
        %v440 = vmul.f32 %v257, %v432
        %v441 = vadd.f32 %v391, %v433
        %v442 = vadd.f32 %v392, %v434
        %v443 = vadd.f32 %v393, %v435
        %v444 = vadd.f32 %v394, %v436
        %v445 = vadd.f32 %v395, %v437
        %v446 = vadd.f32 %v396, %v438
        %v447 = vadd.f32 %v397, %v439
        %v448 = vadd.f32 %v398, %v440
        %s449 = scalar_lea.vmem [#allocation5], 1344
        %v450 = vld [vmem:[%s449] sm:$0xff]
        %v451 = vld [vmem:[%s449 + $0x8] sm:$0xff]
        %v452 = vld [vmem:[%s449 + $0x10] sm:$0xff]
        %v453 = vld [vmem:[%s449 + $0x18] sm:$0xff]
        %v454 = vld [vmem:[%s449 + $0x20] sm:$0xff]
        %v455 = vld [vmem:[%s449 + $0x28] sm:$0xff]
        %v456 = vld [vmem:[%s449 + $0x30] sm:$0xff]
        %v457 = vld [vmem:[%s449 + $0x38] sm:$0xff]
        %v458 = vmul.f32 %v236, %v450
        %v459 = vmul.f32 %v232, %v451
        %v460 = vmul.f32 %v237, %v452
        %v461 = vmul.f32 %v233, %v453
        %v462 = vmul.f32 %v238, %v454
        %v463 = vmul.f32 %v234, %v455
        %v464 = vmul.f32 %v235, %v456
        %v465 = vmul.f32 %v231, %v457
        %v466 = vadd.f32 %v416, %v458
        %v467 = vadd.f32 %v417, %v459
        %v468 = vadd.f32 %v418, %v460
        %v469 = vadd.f32 %v419, %v461
        %v470 = vadd.f32 %v420, %v462
        %v471 = vadd.f32 %v421, %v463
        %v472 = vadd.f32 %v422, %v464
        %v473 = vadd.f32 %v423, %v465
        %s474 = scalar_lea.vmem [#allocation5], 1536
        %v475 = vld [vmem:[%s474] sm:$0xff]
        %v476 = vld [vmem:[%s474 + $0x8] sm:$0xff]
        %v477 = vld [vmem:[%s474 + $0x10] sm:$0xff]
        %v478 = vld [vmem:[%s474 + $0x18] sm:$0xff]
        %v479 = vld [vmem:[%s474 + $0x20] sm:$0xff]
        %v480 = vld [vmem:[%s474 + $0x28] sm:$0xff]
        %v481 = vld [vmem:[%s474 + $0x30] sm:$0xff]
        %v482 = vld [vmem:[%s474 + $0x38] sm:$0xff]
        %v483 = vmul.f32 %v318, %v475
        %v484 = vmul.f32 %v319, %v476
        %v485 = vmul.f32 %v316, %v477
        %v486 = vmul.f32 %v317, %v478
        %v487 = vmul.f32 %v322, %v479
        %v488 = vmul.f32 %v323, %v480
        %v489 = vmul.f32 %v320, %v481
        %v490 = vmul.f32 %v321, %v482
        %v491 = vadd.f32 %v441, %v483
        %v492 = vadd.f32 %v442, %v484
        %v493 = vadd.f32 %v443, %v485
        %v494 = vadd.f32 %v444, %v486
        %v495 = vadd.f32 %v445, %v487
        %v496 = vadd.f32 %v446, %v488
        %v497 = vadd.f32 %v447, %v489
        %v498 = vadd.f32 %v448, %v490
        %v499 = vrot.slane %v204, 7
        %v500 = vrot.slane %v205, 7
        %v501 = vrot.slane %v206, 7
        %v502 = vrot.slane %v207, 7
        %v503 = vrot.slane %v208, 7
        %v504 = vrot.slane %v209, 7
        %v505 = vrot.slane %v210, 7
        %v506 = vrot.slane %v211, 7
        %v507 = vsel %vm249, %v503, %v505
        %v508 = vsel %vm249, %v504, %v506
        %v509 = vsel %vm249, %v501, %v503
        %v510 = vsel %vm249, %v502, %v504
        %v511 = vsel %vm249, %v499, %v501
        %v512 = vsel %vm249, %v500, %v502
        %v513 = vsel %vm249, %v505, %v499
        %v514 = vsel %vm249, %v506, %v500
        %s515 = scalar_lea.vmem [#allocation5], 64
        %v516 = vld [vmem:[%s515] sm:$0xff]
        %v517 = vld [vmem:[%s515 + $0x8] sm:$0xff]
        %v518 = vld [vmem:[%s515 + $0x10] sm:$0xff]
        %v519 = vld [vmem:[%s515 + $0x18] sm:$0xff]
        %v520 = vld [vmem:[%s515 + $0x20] sm:$0xff]
        %v521 = vld [vmem:[%s515 + $0x28] sm:$0xff]
        %v522 = vld [vmem:[%s515 + $0x30] sm:$0xff]
        %v523 = vld [vmem:[%s515 + $0x38] sm:$0xff]
        %v524 = vmul.f32 %v507, %v516
        %v525 = vmul.f32 %v508, %v517
        %v526 = vmul.f32 %v513, %v518
        %v527 = vmul.f32 %v514, %v519
        %v528 = vmul.f32 %v511, %v520
        %v529 = vmul.f32 %v512, %v521
        %v530 = vmul.f32 %v509, %v522
        %v531 = vmul.f32 %v510, %v523
        %v532 = vadd.f32 %v466, %v524
        %v533 = vadd.f32 %v467, %v525
        %v534 = vadd.f32 %v468, %v526
        %v535 = vadd.f32 %v469, %v527
        %v536 = vadd.f32 %v470, %v528
        %v537 = vadd.f32 %v471, %v529
        %v538 = vadd.f32 %v472, %v530
        %v539 = vadd.f32 %v473, %v531
        %s540 = scalar_lea.vmem [#allocation5], 256
        %v541 = vld [vmem:[%s540] sm:$0xff]
        %v542 = vld [vmem:[%s540 + $0x8] sm:$0xff]
        %v543 = vld [vmem:[%s540 + $0x10] sm:$0xff]
        %v544 = vld [vmem:[%s540 + $0x18] sm:$0xff]
        %v545 = vld [vmem:[%s540 + $0x20] sm:$0xff]
        %v546 = vld [vmem:[%s540 + $0x28] sm:$0xff]
        %v547 = vld [vmem:[%s540 + $0x30] sm:$0xff]
        %v548 = vld [vmem:[%s540 + $0x38] sm:$0xff]
        %v549 = vmul.f32 %v210, %v541
        %v550 = vmul.f32 %v211, %v542
        %v551 = vmul.f32 %v204, %v543
        %v552 = vmul.f32 %v205, %v544
        %v553 = vmul.f32 %v206, %v545
        %v554 = vmul.f32 %v207, %v546
        %v555 = vmul.f32 %v208, %v547
        %v556 = vmul.f32 %v209, %v548
        %v557 = vadd.f32 %v491, %v549
        %v558 = vadd.f32 %v492, %v550
        %v559 = vadd.f32 %v493, %v551
        %v560 = vadd.f32 %v494, %v552
        %v561 = vadd.f32 %v495, %v553
        %v562 = vadd.f32 %v496, %v554
        %v563 = vadd.f32 %v497, %v555
        %v564 = vadd.f32 %v498, %v556
        %v565 = vrot.slane %v204, 1
        %v566 = vrot.slane %v205, 1
        %v567 = vrot.slane %v206, 1
        %v568 = vrot.slane %v207, 1
        %v569 = vrot.slane %v208, 1
        %v570 = vrot.slane %v209, 1
        %v571 = vrot.slane %v210, 1
        %v572 = vrot.slane %v211, 1
        %v573 = vsel %vm315, %v569, %v571
        %v574 = vsel %vm315, %v570, %v572
        %v575 = vsel %vm315, %v567, %v569
        %v576 = vsel %vm315, %v568, %v570
        %v577 = vsel %vm315, %v565, %v567
        %v578 = vsel %vm315, %v566, %v568
        %v579 = vsel %vm315, %v571, %v565
        %v580 = vsel %vm315, %v572, %v566
        %s581 = scalar_lea.vmem [#allocation5], 448
        %v582 = vld [vmem:[%s581] sm:$0xff]
        %v583 = vld [vmem:[%s581 + $0x8] sm:$0xff]
        %v584 = vld [vmem:[%s581 + $0x10] sm:$0xff]
        %v585 = vld [vmem:[%s581 + $0x18] sm:$0xff]
        %v586 = vld [vmem:[%s581 + $0x20] sm:$0xff]
        %v587 = vld [vmem:[%s581 + $0x28] sm:$0xff]
        %v588 = vld [vmem:[%s581 + $0x30] sm:$0xff]
        %v589 = vld [vmem:[%s581 + $0x38] sm:$0xff]
        %v590 = vmul.f32 %v579, %v582
        %v591 = vmul.f32 %v580, %v583
        %v592 = vmul.f32 %v577, %v584
        %v593 = vmul.f32 %v578, %v585
        %v594 = vmul.f32 %v575, %v586
        %v595 = vmul.f32 %v576, %v587
        %v596 = vmul.f32 %v573, %v588
        %v597 = vmul.f32 %v574, %v589
        %v598 = vadd.f32 %v532, %v590
        %v599 = vadd.f32 %v533, %v591
        %v600 = vadd.f32 %v534, %v592
        %v601 = vadd.f32 %v535, %v593
        %v602 = vadd.f32 %v536, %v594
        %v603 = vadd.f32 %v537, %v595
        %v604 = vadd.f32 %v538, %v596
        %v605 = vadd.f32 %v539, %v597
        %s606 = scalar_lea.vmem [#allocation5], 640
        %v607 = vld [vmem:[%s606] sm:$0xff]
        %v608 = vld [vmem:[%s606 + $0x8] sm:$0xff]
        %v609 = vld [vmem:[%s606 + $0x10] sm:$0xff]
        %v610 = vld [vmem:[%s606 + $0x18] sm:$0xff]
        %v611 = vld [vmem:[%s606 + $0x20] sm:$0xff]
        %v612 = vld [vmem:[%s606 + $0x28] sm:$0xff]
        %v613 = vld [vmem:[%s606 + $0x30] sm:$0xff]
        %v614 = vld [vmem:[%s606 + $0x38] sm:$0xff]
        %v615 = vmul.f32 %v513, %v607
        %v616 = vmul.f32 %v514, %v608
        %v617 = vmul.f32 %v511, %v609
        %v618 = vmul.f32 %v512, %v610
        %v619 = vmul.f32 %v509, %v611
        %v620 = vmul.f32 %v510, %v612
        %v621 = vmul.f32 %v507, %v613
        %v622 = vmul.f32 %v508, %v614
        %v623 = vadd.f32 %v557, %v615
        %v624 = vadd.f32 %v558, %v616
        %v625 = vadd.f32 %v559, %v617
        %v626 = vadd.f32 %v560, %v618
        %v627 = vadd.f32 %v561, %v619
        %v628 = vadd.f32 %v562, %v620
        %v629 = vadd.f32 %v563, %v621
        %v630 = vadd.f32 %v564, %v622
        %s631 = scalar_lea.vmem [#allocation5], 832
        %v632 = vld [vmem:[%s631] sm:$0xff]
        %v633 = vld [vmem:[%s631 + $0x8] sm:$0xff]
        %v634 = vld [vmem:[%s631 + $0x10] sm:$0xff]
        %v635 = vld [vmem:[%s631 + $0x18] sm:$0xff]
        %v636 = vld [vmem:[%s631 + $0x20] sm:$0xff]
        %v637 = vld [vmem:[%s631 + $0x28] sm:$0xff]
        %v638 = vld [vmem:[%s631 + $0x30] sm:$0xff]
        %v639 = vld [vmem:[%s631 + $0x38] sm:$0xff]
        %v640 = vmul.f32 %v204, %v632
        %v641 = vmul.f32 %v205, %v633
        %v642 = vmul.f32 %v206, %v634
        %v643 = vmul.f32 %v207, %v635
        %v644 = vmul.f32 %v208, %v636
        %v645 = vmul.f32 %v209, %v637
        %v646 = vmul.f32 %v210, %v638
        %v647 = vmul.f32 %v211, %v639
        %v648 = vadd.f32 %v598, %v640
        %v649 = vadd.f32 %v599, %v641
        %v650 = vadd.f32 %v600, %v642
        %v651 = vadd.f32 %v601, %v643
        %v652 = vadd.f32 %v602, %v644
        %v653 = vadd.f32 %v603, %v645
        %v654 = vadd.f32 %v604, %v646
        %v655 = vadd.f32 %v605, %v647
        %s656 = scalar_lea.vmem [#allocation5], 1024
        %v657 = vld [vmem:[%s656] sm:$0xff]
        %v658 = vld [vmem:[%s656 + $0x8] sm:$0xff]
        %v659 = vld [vmem:[%s656 + $0x10] sm:$0xff]
        %v660 = vld [vmem:[%s656 + $0x18] sm:$0xff]
        %v661 = vld [vmem:[%s656 + $0x20] sm:$0xff]
        %v662 = vld [vmem:[%s656 + $0x28] sm:$0xff]
        %v663 = vld [vmem:[%s656 + $0x30] sm:$0xff]
        %v664 = vld [vmem:[%s656 + $0x38] sm:$0xff]
        %v665 = vmul.f32 %v577, %v657
        %v666 = vmul.f32 %v578, %v658
        %v667 = vmul.f32 %v575, %v659
        %v668 = vmul.f32 %v576, %v660
        %v669 = vmul.f32 %v573, %v661
        %v670 = vmul.f32 %v574, %v662
        %v671 = vmul.f32 %v579, %v663
        %v672 = vmul.f32 %v580, %v664
        %v673 = vadd.f32 %v623, %v665
        %v674 = vadd.f32 %v624, %v666
        %v675 = vadd.f32 %v625, %v667
        %v676 = vadd.f32 %v626, %v668
        %v677 = vadd.f32 %v627, %v669
        %v678 = vadd.f32 %v628, %v670
        %v679 = vadd.f32 %v629, %v671
        %v680 = vadd.f32 %v630, %v672
        %s681 = scalar_lea.vmem [#allocation5], 1216
        %v682 = vld [vmem:[%s681] sm:$0xff]
        %v683 = vld [vmem:[%s681 + $0x8] sm:$0xff]
        %v684 = vld [vmem:[%s681 + $0x10] sm:$0xff]
        %v685 = vld [vmem:[%s681 + $0x18] sm:$0xff]
        %v686 = vld [vmem:[%s681 + $0x20] sm:$0xff]
        %v687 = vld [vmem:[%s681 + $0x28] sm:$0xff]
        %v688 = vld [vmem:[%s681 + $0x30] sm:$0xff]
        %v689 = vld [vmem:[%s681 + $0x38] sm:$0xff]
        %v690 = vmul.f32 %v511, %v682
        %v691 = vmul.f32 %v512, %v683
        %v692 = vmul.f32 %v509, %v684
        %v693 = vmul.f32 %v510, %v685
        %v694 = vmul.f32 %v507, %v686
        %v695 = vmul.f32 %v508, %v687
        %v696 = vmul.f32 %v513, %v688
        %v697 = vmul.f32 %v514, %v689
        %v698 = vadd.f32 %v648, %v690
        %v699 = vadd.f32 %v649, %v691
        %v700 = vadd.f32 %v650, %v692
        %v701 = vadd.f32 %v651, %v693
        %v702 = vadd.f32 %v652, %v694
        %v703 = vadd.f32 %v653, %v695
        %v704 = vadd.f32 %v654, %v696
        %v705 = vadd.f32 %v655, %v697
        %s706 = scalar_lea.vmem [#allocation5], 1408
        %v707 = vld [vmem:[%s706] sm:$0xff]
        %v708 = vld [vmem:[%s706 + $0x8] sm:$0xff]
        %v709 = vld [vmem:[%s706 + $0x10] sm:$0xff]
        %v710 = vld [vmem:[%s706 + $0x18] sm:$0xff]
        %v711 = vld [vmem:[%s706 + $0x20] sm:$0xff]
        %v712 = vld [vmem:[%s706 + $0x28] sm:$0xff]
        %v713 = vld [vmem:[%s706 + $0x30] sm:$0xff]
        %v714 = vld [vmem:[%s706 + $0x38] sm:$0xff]
        %v715 = vmul.f32 %v206, %v707
        %v716 = vmul.f32 %v207, %v708
        %v717 = vmul.f32 %v208, %v709
        %v718 = vmul.f32 %v209, %v710
        %v719 = vmul.f32 %v210, %v711
        %v720 = vmul.f32 %v211, %v712
        %v721 = vmul.f32 %v204, %v713
        %v722 = vmul.f32 %v205, %v714
        %v723 = vadd.f32 %v673, %v715
        %v724 = vadd.f32 %v674, %v716
        %v725 = vadd.f32 %v675, %v717
        %v726 = vadd.f32 %v676, %v718
        %v727 = vadd.f32 %v677, %v719
        %v728 = vadd.f32 %v678, %v720
        %v729 = vadd.f32 %v679, %v721
        %v730 = vadd.f32 %v680, %v722
        %s731 = scalar_lea.vmem [#allocation5], 1600
        %v732 = vld [vmem:[%s731] sm:$0xff]
        %v733 = vld [vmem:[%s731 + $0x8] sm:$0xff]
        %v734 = vld [vmem:[%s731 + $0x10] sm:$0xff]
        %v735 = vld [vmem:[%s731 + $0x18] sm:$0xff]
        %v736 = vld [vmem:[%s731 + $0x20] sm:$0xff]
        %v737 = vld [vmem:[%s731 + $0x28] sm:$0xff]
        %v738 = vld [vmem:[%s731 + $0x30] sm:$0xff]
        %v739 = vld [vmem:[%s731 + $0x38] sm:$0xff]
        %v740 = vmul.f32 %v575, %v732
        %v741 = vmul.f32 %v576, %v733
        %v742 = vmul.f32 %v573, %v734
        %v743 = vmul.f32 %v574, %v735
        %v744 = vmul.f32 %v579, %v736
        %v745 = vmul.f32 %v580, %v737
        %v746 = vmul.f32 %v577, %v738
        %v747 = vmul.f32 %v578, %v739
        %v748 = vadd.f32 %v698, %v740
        %v749 = vadd.f32 %v699, %v741
        %v750 = vadd.f32 %v700, %v742
        %v751 = vadd.f32 %v701, %v743
        %v752 = vadd.f32 %v702, %v744
        %v753 = vadd.f32 %v703, %v745
        %v754 = vadd.f32 %v704, %v746
        %v755 = vadd.f32 %v705, %v747
        %756 = vrot.lane.b32.xlu0 %v204, 96
        %v757 = vpop.permute.xlu0 %756
        %758 = vrot.lane.b32.xlu0 %v206, 96
        %v759 = vpop.permute.xlu0 %758
        %760 = vrot.lane.b32.xlu0 %v208, 96
        %v761 = vpop.permute.xlu0 %760
        %762 = vrot.lane.b32.xlu0 %v210, 96
        %v763 = vpop.permute.xlu0 %762
        %764 = vrot.lane.b32.xlu0 %v205, 96
        %v765 = vpop.permute.xlu0 %764
        %766 = vrot.lane.b32.xlu0 %v207, 96
        %v767 = vpop.permute.xlu0 %766
        %768 = vrot.lane.b32.xlu0 %v209, 96
        %v769 = vpop.permute.xlu0 %768
        %770 = vrot.lane.b32.xlu0 %v211, 96
        %v771 = vpop.permute.xlu0 %770
        %vm772 = vcmp.lt.s32.totalorder %v229, 96
        %v773 = vsel %vm772, %v757, %v765
        %v774 = vsel %vm772, %v759, %v767
        %v775 = vsel %vm772, %v761, %v769
        %v776 = vsel %vm772, %v763, %v771
        %v777 = vsel %vm772, %v765, %v757
        %v778 = vsel %vm772, %v767, %v759
        %v779 = vsel %vm772, %v769, %v761
        %v780 = vsel %vm772, %v771, %v763
        %v781 = vrot.slane %v773, 7
        %v782 = vrot.slane %v777, 7
        %v783 = vrot.slane %v774, 7
        %v784 = vrot.slane %v778, 7
        %v785 = vrot.slane %v775, 7
        %v786 = vrot.slane %v779, 7
        %v787 = vrot.slane %v776, 7
        %v788 = vrot.slane %v780, 7
        %v789 = vsel %vm249, %v785, %v787
        %v790 = vsel %vm249, %v786, %v788
        %v791 = vsel %vm249, %v783, %v785
        %v792 = vsel %vm249, %v784, %v786
        %v793 = vsel %vm249, %v781, %v783
        %v794 = vsel %vm249, %v782, %v784
        %v795 = vsel %vm249, %v787, %v781
        %v796 = vsel %vm249, %v788, %v782
        %s797 = scalar_lea.vmem [#allocation5], 128
        %v798 = vld [vmem:[%s797] sm:$0xff]
        %v799 = vld [vmem:[%s797 + $0x8] sm:$0xff]
        %v800 = vld [vmem:[%s797 + $0x10] sm:$0xff]
        %v801 = vld [vmem:[%s797 + $0x18] sm:$0xff]
        %v802 = vld [vmem:[%s797 + $0x20] sm:$0xff]
        %v803 = vld [vmem:[%s797 + $0x28] sm:$0xff]
        %v804 = vld [vmem:[%s797 + $0x30] sm:$0xff]
        %v805 = vld [vmem:[%s797 + $0x38] sm:$0xff]
        %v806 = vmul.f32 %v789, %v798
        %v807 = vmul.f32 %v790, %v799
        %v808 = vmul.f32 %v795, %v800
        %v809 = vmul.f32 %v796, %v801
        %v810 = vmul.f32 %v793, %v802
        %v811 = vmul.f32 %v794, %v803
        %v812 = vmul.f32 %v791, %v804
        %v813 = vmul.f32 %v792, %v805
        %v814 = vadd.f32 %v723, %v806
        %v815 = vadd.f32 %v724, %v807
        %v816 = vadd.f32 %v725, %v808
        %v817 = vadd.f32 %v726, %v809
        %v818 = vadd.f32 %v727, %v810
        %v819 = vadd.f32 %v728, %v811
        %v820 = vadd.f32 %v729, %v812
        %v821 = vadd.f32 %v730, %v813
        %s822 = scalar_lea.vmem [#allocation5], 320
        %v823 = vld [vmem:[%s822] sm:$0xff]
        %v824 = vld [vmem:[%s822 + $0x8] sm:$0xff]
        %v825 = vld [vmem:[%s822 + $0x10] sm:$0xff]
        %v826 = vld [vmem:[%s822 + $0x18] sm:$0xff]
        %v827 = vld [vmem:[%s822 + $0x20] sm:$0xff]
        %v828 = vld [vmem:[%s822 + $0x28] sm:$0xff]
        %v829 = vld [vmem:[%s822 + $0x30] sm:$0xff]
        %v830 = vld [vmem:[%s822 + $0x38] sm:$0xff]
        %v831 = vmul.f32 %v776, %v823
        %v832 = vmul.f32 %v780, %v824
        %v833 = vmul.f32 %v773, %v825
        %v834 = vmul.f32 %v777, %v826
        %v835 = vmul.f32 %v774, %v827
        %v836 = vmul.f32 %v778, %v828
        %v837 = vmul.f32 %v775, %v829
        %v838 = vmul.f32 %v779, %v830
        %v839 = vadd.f32 %v748, %v831
        %v840 = vadd.f32 %v749, %v832
        %v841 = vadd.f32 %v750, %v833
        %v842 = vadd.f32 %v751, %v834
        %v843 = vadd.f32 %v752, %v835
        %v844 = vadd.f32 %v753, %v836
        %v845 = vadd.f32 %v754, %v837
        %v846 = vadd.f32 %v755, %v838
        %v847 = vrot.slane %v773, 1
        %v848 = vrot.slane %v777, 1
        %v849 = vrot.slane %v774, 1
        %v850 = vrot.slane %v778, 1
        %v851 = vrot.slane %v775, 1
        %v852 = vrot.slane %v779, 1
        %v853 = vrot.slane %v776, 1
        %v854 = vrot.slane %v780, 1
        %v855 = vsel %vm315, %v851, %v853
        %v856 = vsel %vm315, %v852, %v854
        %v857 = vsel %vm315, %v849, %v851
        %v858 = vsel %vm315, %v850, %v852
        %v859 = vsel %vm315, %v847, %v849
        %v860 = vsel %vm315, %v848, %v850
        %v861 = vsel %vm315, %v853, %v847
        %v862 = vsel %vm315, %v854, %v848
        %s863 = scalar_lea.vmem [#allocation5], 512
        %v864 = vld [vmem:[%s863] sm:$0xff]
        %v865 = vld [vmem:[%s863 + $0x8] sm:$0xff]
        %v866 = vld [vmem:[%s863 + $0x10] sm:$0xff]
        %v867 = vld [vmem:[%s863 + $0x18] sm:$0xff]
        %v868 = vld [vmem:[%s863 + $0x20] sm:$0xff]
        %v869 = vld [vmem:[%s863 + $0x28] sm:$0xff]
        %v870 = vld [vmem:[%s863 + $0x30] sm:$0xff]
        %v871 = vld [vmem:[%s863 + $0x38] sm:$0xff]
        %v872 = vmul.f32 %v861, %v864
        %v873 = vmul.f32 %v862, %v865
        %v874 = vmul.f32 %v859, %v866
        %v875 = vmul.f32 %v860, %v867
        %v876 = vmul.f32 %v857, %v868
        %v877 = vmul.f32 %v858, %v869
        %v878 = vmul.f32 %v855, %v870
        %v879 = vmul.f32 %v856, %v871
        %v880 = vadd.f32 %v814, %v872
        %v881 = vadd.f32 %v815, %v873
        %v882 = vadd.f32 %v816, %v874
        %v883 = vadd.f32 %v817, %v875
        %v884 = vadd.f32 %v818, %v876
        %v885 = vadd.f32 %v819, %v877
        %v886 = vadd.f32 %v820, %v878
        %v887 = vadd.f32 %v821, %v879
        %s888 = scalar_lea.vmem [#allocation5], 704
        %v889 = vld [vmem:[%s888] sm:$0xff]
        %v890 = vld [vmem:[%s888 + $0x8] sm:$0xff]
        %v891 = vld [vmem:[%s888 + $0x10] sm:$0xff]
        %v892 = vld [vmem:[%s888 + $0x18] sm:$0xff]
        %v893 = vld [vmem:[%s888 + $0x20] sm:$0xff]
        %v894 = vld [vmem:[%s888 + $0x28] sm:$0xff]
        %v895 = vld [vmem:[%s888 + $0x30] sm:$0xff]
        %v896 = vld [vmem:[%s888 + $0x38] sm:$0xff]
        %v897 = vmul.f32 %v795, %v889
        %v898 = vmul.f32 %v796, %v890
        %v899 = vmul.f32 %v793, %v891
        %v900 = vmul.f32 %v794, %v892
        %v901 = vmul.f32 %v791, %v893
        %v902 = vmul.f32 %v792, %v894
        %v903 = vmul.f32 %v789, %v895
        %v904 = vmul.f32 %v790, %v896
        %v905 = vadd.f32 %v839, %v897
        %v906 = vadd.f32 %v840, %v898
        %v907 = vadd.f32 %v841, %v899
        %v908 = vadd.f32 %v842, %v900
        %v909 = vadd.f32 %v843, %v901
        %v910 = vadd.f32 %v844, %v902
        %v911 = vadd.f32 %v845, %v903
        %v912 = vadd.f32 %v846, %v904
        %s913 = scalar_lea.vmem [#allocation5], 896
        %v914 = vld [vmem:[%s913] sm:$0xff]
        %v915 = vld [vmem:[%s913 + $0x8] sm:$0xff]
        %v916 = vld [vmem:[%s913 + $0x10] sm:$0xff]
        %v917 = vld [vmem:[%s913 + $0x18] sm:$0xff]
        %v918 = vld [vmem:[%s913 + $0x20] sm:$0xff]
        %v919 = vld [vmem:[%s913 + $0x28] sm:$0xff]
        %v920 = vld [vmem:[%s913 + $0x30] sm:$0xff]
        %v921 = vld [vmem:[%s913 + $0x38] sm:$0xff]
        %v922 = vmul.f32 %v773, %v914
        %v923 = vmul.f32 %v777, %v915
        %v924 = vmul.f32 %v774, %v916
        %v925 = vmul.f32 %v778, %v917
        %v926 = vmul.f32 %v775, %v918
        %v927 = vmul.f32 %v779, %v919
        %v928 = vmul.f32 %v776, %v920
        %v929 = vmul.f32 %v780, %v921
        %v930 = vadd.f32 %v880, %v922
        %v931 = vadd.f32 %v881, %v923
        %v932 = vadd.f32 %v882, %v924
        %v933 = vadd.f32 %v883, %v925
        %v934 = vadd.f32 %v884, %v926
        %v935 = vadd.f32 %v885, %v927
        %v936 = vadd.f32 %v886, %v928
        %v937 = vadd.f32 %v887, %v929
        %s938 = scalar_lea.vmem [#allocation5], 1088
        %v939 = vld [vmem:[%s938] sm:$0xff]
        %v940 = vld [vmem:[%s938 + $0x8] sm:$0xff]
        %v941 = vld [vmem:[%s938 + $0x10] sm:$0xff]
        %v942 = vld [vmem:[%s938 + $0x18] sm:$0xff]
        %v943 = vld [vmem:[%s938 + $0x20] sm:$0xff]
        %v944 = vld [vmem:[%s938 + $0x28] sm:$0xff]
        %v945 = vld [vmem:[%s938 + $0x30] sm:$0xff]
        %v946 = vld [vmem:[%s938 + $0x38] sm:$0xff]
        %v947 = vmul.f32 %v859, %v939
        %v948 = vmul.f32 %v860, %v940
        %v949 = vmul.f32 %v857, %v941
        %v950 = vmul.f32 %v858, %v942
        %v951 = vmul.f32 %v855, %v943
        %v952 = vmul.f32 %v856, %v944
        %v953 = vmul.f32 %v861, %v945
        %v954 = vmul.f32 %v862, %v946
        %v955 = vadd.f32 %v905, %v947
        %v956 = vadd.f32 %v906, %v948
        %v957 = vadd.f32 %v907, %v949
        %v958 = vadd.f32 %v908, %v950
        %v959 = vadd.f32 %v909, %v951
        %v960 = vadd.f32 %v910, %v952
        %v961 = vadd.f32 %v911, %v953
        %v962 = vadd.f32 %v912, %v954
        %s963 = scalar_lea.vmem [#allocation5], 1280
        %v964 = vld [vmem:[%s963] sm:$0xff]
        %v965 = vld [vmem:[%s963 + $0x8] sm:$0xff]
        %v966 = vld [vmem:[%s963 + $0x10] sm:$0xff]
        %v967 = vld [vmem:[%s963 + $0x18] sm:$0xff]
        %v968 = vld [vmem:[%s963 + $0x20] sm:$0xff]
        %v969 = vld [vmem:[%s963 + $0x28] sm:$0xff]
        %v970 = vld [vmem:[%s963 + $0x30] sm:$0xff]
        %v971 = vld [vmem:[%s963 + $0x38] sm:$0xff]
        %v972 = vmul.f32 %v793, %v964
        %v973 = vmul.f32 %v794, %v965
        %v974 = vmul.f32 %v791, %v966
        %v975 = vmul.f32 %v792, %v967
        %v976 = vmul.f32 %v789, %v968
        %v977 = vmul.f32 %v790, %v969
        %v978 = vmul.f32 %v795, %v970
        %v979 = vmul.f32 %v796, %v971
        %v980 = vadd.f32 %v930, %v972
        %v981 = vadd.f32 %v931, %v973
        %v982 = vadd.f32 %v932, %v974
        %v983 = vadd.f32 %v933, %v975
        %v984 = vadd.f32 %v934, %v976
        %v985 = vadd.f32 %v935, %v977
        %v986 = vadd.f32 %v936, %v978
        %v987 = vadd.f32 %v937, %v979
        %s988 = scalar_lea.vmem [#allocation5], 1472
        %v989 = vld [vmem:[%s988] sm:$0xff]
        %v990 = vld [vmem:[%s988 + $0x8] sm:$0xff]
        %v991 = vld [vmem:[%s988 + $0x10] sm:$0xff]
        %v992 = vld [vmem:[%s988 + $0x18] sm:$0xff]
        %v993 = vld [vmem:[%s988 + $0x20] sm:$0xff]
        %v994 = vld [vmem:[%s988 + $0x28] sm:$0xff]
        %v995 = vld [vmem:[%s988 + $0x30] sm:$0xff]
        %v996 = vld [vmem:[%s988 + $0x38] sm:$0xff]
        %v997 = vmul.f32 %v774, %v989
        %v998 = vmul.f32 %v778, %v990
        %v999 = vmul.f32 %v775, %v991
        %v1000 = vmul.f32 %v779, %v992
        %v1001 = vmul.f32 %v776, %v993
        %v1002 = vmul.f32 %v780, %v994
        %v1003 = vmul.f32 %v773, %v995
        %v1004 = vmul.f32 %v777, %v996
        %v1005 = vadd.f32 %v955, %v997
        %v1006 = vadd.f32 %v956, %v998
        %v1007 = vadd.f32 %v957, %v999
        %v1008 = vadd.f32 %v958, %v1000
        %v1009 = vadd.f32 %v959, %v1001
        %v1010 = vadd.f32 %v960, %v1002
        %v1011 = vadd.f32 %v961, %v1003
        %v1012 = vadd.f32 %v962, %v1004
        %s1013 = scalar_lea.vmem [#allocation5], 1664
        %v1014 = vld [vmem:[%s1013] sm:$0xff]
        %v1015 = vld [vmem:[%s1013 + $0x8] sm:$0xff]
        %v1016 = vld [vmem:[%s1013 + $0x10] sm:$0xff]
        %v1017 = vld [vmem:[%s1013 + $0x18] sm:$0xff]
        %v1018 = vld [vmem:[%s1013 + $0x20] sm:$0xff]
        %v1019 = vld [vmem:[%s1013 + $0x28] sm:$0xff]
        %v1020 = vld [vmem:[%s1013 + $0x30] sm:$0xff]
        %v1021 = vld [vmem:[%s1013 + $0x38] sm:$0xff]
        %v1022 = vmul.f32 %v857, %v1014
        %v1023 = vmul.f32 %v858, %v1015
        %v1024 = vmul.f32 %v855, %v1016
        %v1025 = vmul.f32 %v856, %v1017
        %v1026 = vmul.f32 %v861, %v1018
        %v1027 = vmul.f32 %v862, %v1019
        %v1028 = vmul.f32 %v859, %v1020
        %v1029 = vmul.f32 %v860, %v1021
        %v1030 = vadd.f32 %v980, %v1022
        %v1031 = vadd.f32 %v981, %v1023
        %v1032 = vadd.f32 %v982, %v1024
        %v1033 = vadd.f32 %v983, %v1025
        %v1034 = vadd.f32 %v984, %v1026
        %v1035 = vadd.f32 %v985, %v1027
        %v1036 = vadd.f32 %v986, %v1028
        %v1037 = vadd.f32 %v987, %v1029
        %v1038 = vld [vmem:[%s2] sm:$0x3]
        %v1040 = vlaneseq
        %v1041 = vshrl.u32 %v1040, 7
        %v1042 = vsub.s32 0, %v1041
        %v1043 = vrot.slane %v1038, %v1042
        %v1044 = vlaneseq
        %v1045 = vshrl.u32 %v1044, 7
        %v1046 = vsub.s32 1, %v1045
        %v1047 = vrot.slane %v1038, %v1046
        %v1050 = vadd.f32 %v1005, %v1043
        %v1051 = vadd.f32 %v1006, %v1047
        %v1052 = vadd.f32 %v1007, %v1043
        %v1053 = vadd.f32 %v1008, %v1047
        %v1054 = vadd.f32 %v1009, %v1043
        %v1055 = vadd.f32 %v1010, %v1047
        %v1056 = vadd.f32 %v1011, %v1043
        %v1057 = vadd.f32 %v1012, %v1047
        %v1058 = vadd.f32 %v1030, %v1050
        %v1059 = vadd.f32 %v1031, %v1051
        %v1060 = vadd.f32 %v1032, %v1052
        %v1061 = vadd.f32 %v1033, %v1053
        %v1062 = vadd.f32 %v1034, %v1054
        %v1063 = vadd.f32 %v1035, %v1055
        %v1064 = vadd.f32 %v1036, %v1056
        %v1065 = vadd.f32 %v1037, %v1057
        %1066 = vst [vmem:[%s203] sm:$0xff] %v1058
        %1067 = vst [vmem:[%s203 + $0x8] sm:$0xff] %v1059
        %1068 = vst [vmem:[%s203 + $0x10] sm:$0xff] %v1060
        %1069 = vst [vmem:[%s203 + $0x18] sm:$0xff] %v1061
        %1070 = vst [vmem:[%s203 + $0x20] sm:$0xff] %v1062
        %1071 = vst [vmem:[%s203 + $0x28] sm:$0xff] %v1063
        %1072 = vst [vmem:[%s203 + $0x30] sm:$0xff] %v1064
        %1073 = vst [vmem:[%s203 + $0x38] sm:$0xff] %v1065
        %s1074 = sand.u32 %s97, 1
        %s1075 = scalar_lea.sflag [#allocation4], %s1074
        %s1076 = sand.u32 %s97, 1
        %s1077 = smul.addr %s1076, 64
        %s1078 = scalar_lea.vmem [#allocation7], %s1077
        // Predicated region
        $region41: #{tpu_custom_call.1} parent=31 // pred_check
          %p1079 = pneg %p107
        $region42: #{tpu_custom_call.1} parent=31 // pred_check_branch
          %1081 = sbr.rel (%p1079) target = $region44
        $region43: #{tpu_custom_call.1} parent=31 // pred_region
          %s1083 = ssub.s32 1024, 1024
          %1084 = vsyncadd %s1075, %s1083
          %s1085 = smul.addr %s21, 8
          %s1086 = smul.addr %s1085, 128
          %s1087 = scalar_lea.hbm %s3, %s1086
          %s1088 = sshll.u32 %s1078, 4
          %s1089 = int_to_ptr.vmem [resolvable:$true] %s1088
          %1094 = dma.vmem_to_hbm [thread:$0]  %s1089, 1024, %s1087, %s1075, 256, 256, 16
        $region44: #{tpu_custom_call.1} parent=31 // pred_fallthru
          _
      $region32: #{tpu_custom_call.1} parent=5 // pred_fallthru
        _
      %p1095 = scmp.le.s32.totalorder 2, %s16
      // Predicated region
      $region45: #{tpu_custom_call.1} parent=5 // pred_check
        %p1096 = pneg %p1095
      $region46: #{tpu_custom_call.1} parent=5 // pred_check_branch
        %1098 = sbr.rel (%p1096) target = $region48
      $region47: #{tpu_custom_call.1} parent=5 // pred_region
        %s1099 = ssub.s32 %s16, 2
        // Predicated region
        $region49: #{tpu_custom_call.1} parent=47 // pred_check
          %p1100 = pneg %p113
        $region50: #{tpu_custom_call.1} parent=47 // pred_check_branch
          %1102 = sbr.rel (%p1100) target = $region52
        $region51: #{tpu_custom_call.1} parent=47 // pred_region
          %s1103 = sand.u32 %s98, 1
          %s1104 = scalar_lea.sflag [#allocation4], %s1103
          %s1105 = sand.u32 %s98, 1
          %s1106 = smul.addr %s1105, 64
          %s1107 = scalar_lea.vmem [#allocation7], %s1106
          %1108 = dma.done %s1104, 1024
        $region52: #{tpu_custom_call.1} parent=47 // pred_fallthru
          _
      $region48: #{tpu_custom_call.1} parent=5 // pred_fallthru
        _
    $region6: #{tpu_custom_call.1} parent=1 // loop_footer
      %s20 = sadd.s32 1, %s16
    $region7: #{tpu_custom_call.1} parent=1 // loop_footer_branch
      %15 = sbr.rel target = $region3
    $region8: #{tpu_custom_call.1} parent=1 // loop_exit
      _
    %1109 = vsyncpa [#allocation3], 1
    %s1110 = scalar_lea.sflag [#allocation3], 1
    %1111 = vsyncpa %s1110, 1
    %1112 = vsyncpa [#allocation6], 1
    %1113 = vsyncpa [#allocation4], 1
    %s1114 = scalar_lea.sflag [#allocation4], 1
    %1115 = vsyncpa %s1114, 1

</llo_original>
